<compile_context>
chip_gen: v5e
topology: v5e:2x2
jax: 0.10.0
libtpu: 0.0.40
codegen_flags: <defaults>
</compile_context>

<pallas_src>
import functools
import math

import jax
import jax.numpy as jnp
from jax import lax
from jax.experimental import pallas as pl
from jax.experimental.pallas import tpu as pltpu


# --------------------------------- config ------------------------------------

# TODO(synk): flip to True on v7x (2 TensorCores/chip) to shard the leading
# independent grid axis across both cores; plain PARALLEL does not split work.
_USE_CORE_PARALLEL = False

_VMEM_LIMIT_BYTES = 48 * 1024 * 1024   # explicit scoped-VMEM limit (safe on 64 MiB v7x)
_ATTN_VMEM_BUDGET = 36 * 1024 * 1024   # target for attention tile working set


def _lead_sem():
    return pltpu.CORE_PARALLEL if _USE_CORE_PARALLEL else pltpu.PARALLEL


# ------------------------------ tiling helpers --------------------------------

def _pick_tile(dim, target, unit):
    """Largest multiple of `unit` that divides `dim` and is <= target; else `dim`.

    The result always satisfies the TPU BlockSpec rule (multiple of the
    sublane/lane unit, or equal to the full array dim) and divides `dim`
    exactly, so no grid masking is needed.
    """
    t = (min(target, dim) // unit) * unit
    while t >= unit:
        if dim % t == 0:
            return t
        t -= unit
    return dim


def _attn_vmem_bytes(tq, tkv, dh, e, heads, head_grid):
    """Rough working-set estimate: double-buffered bf16 I/O tiles + f32 scratch."""
    pad = lambda n: ((n + 127) // 128) * 128   # lane padding of the minor dim
    if head_grid:
        io = 2 * 2 * (tq * e + 2 * tkv * e + tq * e)              # q, k, v, out
        sc = 4 * (2 * tq * pad(1) + tq * pad(e))                  # m, l, acc
    else:
        io = 2 * 2 * (tq * dh + 2 * tkv * dh + tq * dh)
        sc = 4 * (2 * heads * tq * pad(1) + heads * tq * pad(e))
    return io + sc


def _attn_tiles(T, Tkv, dh, e, heads, head_grid):
    """Pick (tq, tkv) starting from large targets, shrinking to fit the VMEM budget."""
    tq_target, tkv_target = 512, 512
    while True:
        tq = _pick_tile(T, tq_target, 16)     # bf16 second-minor -> unit 16
        tkv = _pick_tile(Tkv, tkv_target, 16)
        if _attn_vmem_bytes(tq, tkv, dh, e, heads, head_grid) <= _ATTN_VMEM_BUDGET:
            return tq, tkv
        if tkv_target > 64:
            tkv_target //= 2
        elif tq_target > 64:
            tq_target //= 2
        else:
            return tq, tkv


# --------------------- fused multi-output projection matmul -------------------

def _proj_kernel(*refs, n_out, has_bias):
    """refs = (x, w_0..w_{n-1}, [b_0..b_{n-1}], o_0..o_{n-1}, acc_0..acc_{n-1}).

    One activation tile read feeds all n_out matmuls (Q/K/V fusion); the f32
    accumulators live in VMEM across the K grid axis; activation is cast to
    bf16 in-kernel (no standalone cast pass, f32 read from HBM exactly once).
    """
    x_ref = refs[0]
    w_refs = refs[1:1 + n_out]
    off = 1 + n_out
    b_refs = refs[off:off + n_out] if has_bias else ()
    off += n_out if has_bias else 0
    o_refs = refs[off:off + n_out]
    acc_refs = refs[off + n_out:]

    kk = pl.program_id(2)

    @pl.when(kk == 0)
    def _():
        for acc in acc_refs:
            acc[...] = jnp.zeros(acc.shape, jnp.float32)

    xt = x_ref[...].astype(jnp.bfloat16)       # in-kernel cast (VPU, on the tile)
    for w, acc in zip(w_refs, acc_refs):
        acc[...] += jnp.dot(xt, w[...], preferred_element_type=jnp.float32)

    @pl.when(kk == pl.num_programs(2) - 1)
    def _():
        for i, o in enumerate(o_refs):
            r = acc_refs[i][...]
            if has_bias:
                r = r + b_refs[i][...]
            o[...] = r.astype(o.dtype)


def _pallas_proj(x, weights, biases=None, *, out_dtype):
    """x: (M, K) f32/bf16; weights: list of (K, N) bf16 (shared N); optional
    biases: list of (1, N) f32.  Returns a list of (M, N) out_dtype arrays."""
    M, K = x.shape
    N = weights[0].shape[1]
    n_out = len(weights)
    has_bias = biases is not None

    tm = _pick_tile(M, 512, 16)
    tn = _pick_tile(N, 512, 128)
    tk = _pick_tile(K, 512, 128)
    grid = (M // tm, N // tn, K // tk)

    in_specs = [pl.BlockSpec((tm, tk), lambda i, j, k: (i, k))]
    in_specs += [pl.BlockSpec((tk, tn), lambda i, j, k: (k, j))] * n_out
    args = [x] + list(weights)
    if has_bias:
        in_specs += [pl.BlockSpec((1, tn), lambda i, j, k: (0, j))] * n_out
        args += list(biases)

    kernel = functools.partial(_proj_kernel, n_out=n_out, has_bias=has_bias)

    out = pl.pallas_call(
        kernel,
        out_shape=[jax.ShapeDtypeStruct((M, N), out_dtype)] * n_out,
        grid=grid,
        in_specs=in_specs,
        out_specs=[pl.BlockSpec((tm, tn), lambda i, j, k: (i, j))] * n_out,
        scratch_shapes=[pltpu.VMEM((tm, tn), jnp.float32)] * n_out,
        compiler_params=pltpu.CompilerParams(
            dimension_semantics=(_lead_sem(), pltpu.PARALLEL, pltpu.ARBITRARY),
            vmem_limit_bytes=_VMEM_LIMIT_BYTES),
    )(*args)
    if not isinstance(out, (list, tuple)):
        out = [out]
    return list(out)


# --------------------------- flash-style attention ----------------------------

def _flash_attn_head_kernel(q_ref, k_ref, v_ref, o_ref, m_sc, l_sc, acc_sc,
                            *, approx_recip):
    """Per-head grid path (dim_heads % 128 == 0): full 128-lane-aligned tiles,
    no sub-lane slices, single lane-dense finalize store, tiny VMEM footprint.
    q_ref: (1, tq, e), k_ref/v_ref: (1, tkv, e), o_ref: (1, tq, e)."""
    ki = pl.program_id(3)

    @pl.when(ki == 0)
    def _():
        m_sc[...] = jnp.full(m_sc.shape, -jnp.inf, jnp.float32)
        l_sc[...] = jnp.zeros(l_sc.shape, jnp.float32)
        acc_sc[...] = jnp.zeros(acc_sc.shape, jnp.float32)

    q = q_ref[0]
    k = k_ref[0]
    v = v_ref[0]

    # NT contraction on the MXU (no k.T materialization), f32 accumulation.
    s = lax.dot_general(q, k, (((1,), (1,)), ((), ())),
                        preferred_element_type=jnp.float32)       # (tq, tkv)

    m_prev = m_sc[...]
    m_new = jnp.maximum(m_prev, jnp.max(s, axis=-1, keepdims=True))
    alpha = jnp.exp(m_prev - m_new)
    p = jnp.exp(s - m_new)

    l_sc[...] = alpha * l_sc[...] + jnp.sum(p, axis=-1, keepdims=True)
    acc_sc[...] = alpha * acc_sc[...] + lax.dot_general(
        p.astype(v.dtype), v, (((1,), (0,)), ((), ())),
        preferred_element_type=jnp.float32)
    m_sc[...] = m_new

    @pl.when(ki == pl.num_programs(3) - 1)
    def _():
        if approx_recip:
            inv = pl.reciprocal(l_sc[...], approx=True)
        else:
            inv = 1.0 / l_sc[...]
        o_ref[0] = (acc_sc[...] * inv).astype(o_ref.dtype)


def _flash_attn_kernel(q_ref, k_ref, v_ref, o_ref, m_sc, l_sc, acc_sc,
                       *, heads, dim_heads, approx_recip):
    """General fallback (dim_heads not a multiple of 128): all heads handled per
    step with static lane slices of the lane-dense (B, T, H*e) tiles.
    q_ref: (1, tq, H*e), k_ref/v_ref: (1, tkv, H*e), o_ref: (1, tq, H*e)."""
    ki = pl.program_id(2)

    @pl.when(ki == 0)
    def _():
        m_sc[...] = jnp.full(m_sc.shape, -jnp.inf, jnp.float32)
        l_sc[...] = jnp.zeros(l_sc.shape, jnp.float32)
        acc_sc[...] = jnp.zeros(acc_sc.shape, jnp.float32)

    q = q_ref[0]      # (tq,  H*e)
    k = k_ref[0]      # (tkv, H*e)
    v = v_ref[0]      # (tkv, H*e)

    for h in range(heads):
        lo = h * dim_heads
        hi = lo + dim_heads
        qh = q[:, lo:hi]
        kh = k[:, lo:hi]
        vh = v[:, lo:hi]

        s = lax.dot_general(qh, kh, (((1,), (1,)), ((), ())),
                            preferred_element_type=jnp.float32)   # (tq, tkv)

        m_prev = m_sc[h]                                          # (tq, 1)
        m_new = jnp.maximum(m_prev, jnp.max(s, axis=-1, keepdims=True))
        alpha = jnp.exp(m_prev - m_new)
        p = jnp.exp(s - m_new)

        l_sc[h] = alpha * l_sc[h] + jnp.sum(p, axis=-1, keepdims=True)
        acc_sc[h] = alpha * acc_sc[h] + lax.dot_general(
            p.astype(vh.dtype), vh, (((1,), (0,)), ((), ())),
            preferred_element_type=jnp.float32)                   # (tq, e)
        m_sc[h] = m_new

    @pl.when(ki == pl.num_programs(2) - 1)
    def _():
        outs = []
        for h in range(heads):
            if approx_recip:
                inv_l = pl.reciprocal(l_sc[h], approx=True)
            else:
                inv_l = 1.0 / l_sc[h]
            outs.append(acc_sc[h] * inv_l)
        # Single lane-dense store of the full H*e width.
        o_ref[0] = jnp.concatenate(outs, axis=-1).astype(o_ref.dtype)


def _pallas_flash_attention(q, k, v, heads, dim_heads, *, out_dtype,
                            approx_recip=True):
    """q: (B, T, H*e), k/v: (B, Tkv, H*e) -> (B, T, H*e)."""
    B, T, dh = q.shape
    Tkv = k.shape[1]
    head_grid = (dim_heads % 128 == 0)
    tq, tkv = _attn_tiles(T, Tkv, dh, dim_heads, heads, head_grid)

    if head_grid:
        grid = (B, heads, T // tq, Tkv // tkv)
        kernel = functools.partial(_flash_attn_head_kernel,
                                   approx_recip=approx_recip)
        q_spec = pl.BlockSpec((1, tq, dim_heads), lambda b, h, qi, ki: (b, qi, h))
        kv_spec = pl.BlockSpec((1, tkv, dim_heads), lambda b, h, qi, ki: (b, ki, h))
        o_spec = pl.BlockSpec((1, tq, dim_heads), lambda b, h, qi, ki: (b, qi, h))
        scratch = [pltpu.VMEM((tq, 1), jnp.float32),                 # running max m
                   pltpu.VMEM((tq, 1), jnp.float32),                 # running sum l
                   pltpu.VMEM((tq, dim_heads), jnp.float32)]         # output acc
        sem = (_lead_sem(), pltpu.PARALLEL, pltpu.PARALLEL, pltpu.ARBITRARY)
    else:
        grid = (B, T // tq, Tkv // tkv)
        kernel = functools.partial(_flash_attn_kernel, heads=heads,
                                   dim_heads=dim_heads,
                                   approx_recip=approx_recip)
        q_spec = pl.BlockSpec((1, tq, dh), lambda b, qi, ki: (b, qi, 0))
        kv_spec = pl.BlockSpec((1, tkv, dh), lambda b, qi, ki: (b, ki, 0))
        o_spec = pl.BlockSpec((1, tq, dh), lambda b, qi, ki: (b, qi, 0))
        scratch = [pltpu.VMEM((heads, tq, 1), jnp.float32),
                   pltpu.VMEM((heads, tq, 1), jnp.float32),
                   pltpu.VMEM((heads, tq, dim_heads), jnp.float32)]
        sem = (_lead_sem(), pltpu.PARALLEL, pltpu.ARBITRARY)

    return pl.pallas_call(
        kernel,
        out_shape=jax.ShapeDtypeStruct((B, T, dh), out_dtype),
        grid=grid,
        in_specs=[q_spec, kv_spec, kv_spec],
        out_specs=o_spec,
        scratch_shapes=scratch,
        compiler_params=pltpu.CompilerParams(
            dimension_semantics=sem, vmem_limit_bytes=_VMEM_LIMIT_BYTES),
    )(q, k, v)


# ------------------------------- forward pass ---------------------------------

def prepare_params(params, heads, dim_heads):
    """One-time weight preparation, hoisted out of the forward hot path:
    transpose to (K, N), fold 1/sqrt(e) into wq (in f32), cast to bf16."""
    dh = heads * dim_heads
    d = params["wo"].shape[0]
    scale = dim_heads ** (-0.5)
    cdt = jnp.bfloat16
    return {
        "wq_t": (params["wq"].astype(jnp.float32) * scale).T.astype(cdt),  # (d, dh)
        "wk_t": params["wkv"][:dh].T.astype(cdt),                          # (d, dh)
        "wv_t": params["wkv"][dh:].T.astype(cdt),                          # (d, dh)
        "wo_t": params["wo"].T.astype(cdt),                                # (dh, d)
        "bo": params["bo"].astype(jnp.float32).reshape(1, d),
    }


def self_attention(x, prepared, heads, dim_heads, kv=None, *,
                   approx_recip=True):
    """Equivalent of SelfAttention.forward.

    x:  (B, T, dim) float32;  kv: optional (B, T_kv, dim) float32
    prepared: output of prepare_params() (pre-transposed / pre-scaled bf16).
    """
    b, t, d = x.shape
    dh = heads * dim_heads
    cdt = jnp.bfloat16

    x2 = x.reshape(b * t, d)          # f32; the bf16 cast happens inside the kernel
    if kv is None:
        # Fused Q/K/V projection: one kernel, three outputs, x streamed once.
        q2, k2, v2 = _pallas_proj(
            x2, [prepared["wq_t"], prepared["wk_t"], prepared["wv_t"]],
            out_dtype=cdt)
        t_kv = t
    else:
        t_kv = kv.shape[1]
        kv2 = kv.reshape(b * t_kv, d)
        (q2,) = _pallas_proj(x2, [prepared["wq_t"]], out_dtype=cdt)
        k2, v2 = _pallas_proj(kv2, [prepared["wk_t"], prepared["wv_t"]],
                              out_dtype=cdt)

    # Reshapes are metadata-only; q/k/v stay in the lane-dense (B, T, H*e) layout.
    q = q2.reshape(b, t, dh)
    k = k2.reshape(b, t_kv, dh)
    v = v2.reshape(b, t_kv, dh)

    o = _pallas_flash_attention(q, k, v, heads, dim_heads, out_dtype=cdt,
                                approx_recip=approx_recip)

    # Output projection (+bias) back to the input dtype.
    (out,) = _pallas_proj(o.reshape(b * t, dh), [prepared["wo_t"]],
                          biases=[prepared["bo"]], out_dtype=x.dtype)
    return out.reshape(b, t, d)


# ----------------------------- reference (plain JAX) ---------------------------

def self_attention_ref(x, params, heads, dim_heads, kv=None):
    kv_in = x if kv is None else kv
    b, t, d = x.shape
    dh = heads * dim_heads
    q = x @ params["wq"].T
    kvp = kv_in @ params["wkv"].T
    k, v = kvp[..., :dh], kvp[..., dh:]
    merge = lambda z: (z.reshape(b, -1, heads, dim_heads)
                        .transpose(0, 2, 1, 3)
                        .reshape(b * heads, -1, dim_heads))
    q, k, v = merge(q), merge(k), merge(v)
    dots = jnp.einsum('bie,bje->bij', q, k) * dim_heads ** (-0.5)
    dots = jax.nn.softmax(dots, axis=-1)
    o = jnp.einsum('bij,bje->bie', dots, v)
    o = (o.reshape(b, heads, -1, dim_heads)
          .transpose(0, 2, 1, 3)
          .reshape(b, -1, dh))
    return o @ params["wo"].T + params["bo"]


# ----------------------------------- main --------------------------------------

if __name__ == "__main__":
    B, T, DIM = 2, 8, 32
    HEADS = 4
    DIM_HEADS = DIM // HEADS          # 8
    DIM_HIDDEN = HEADS * DIM_HEADS    # 32

    key = jax.random.PRNGKey(0)
    kx, kq, kkv, kwo, kbo = jax.random.split(key, 5)

    def uniform(k, shape, fan_in):
        bound = 1.0 / math.sqrt(fan_in)
        return jax.random.uniform(k, shape, jnp.float32, -bound, bound)

    params = {
        "wq":  uniform(kq,  (DIM_HIDDEN, DIM), DIM),
        "wkv": uniform(kkv, (2 * DIM_HIDDEN, DIM), DIM),
        "wo":  uniform(kwo, (DIM, DIM_HIDDEN), DIM_HIDDEN),
        "bo":  uniform(kbo, (DIM,), DIM_HIDDEN),
    }

    x = jax.random.normal(kx, (B, T, DIM), jnp.float32)

    prepared = prepare_params(params, HEADS, DIM_HEADS)
    out = self_attention(x, prepared, HEADS, DIM_HEADS)
    out = jax.block_until_ready(out)

    ref = self_attention_ref(x, params, HEADS, DIM_HEADS)
    assert out.shape == (B, T, DIM)
    max_err = float(jnp.max(jnp.abs(out - ref)))
    # bf16 MXU operands (f32 accumulation / softmax stats) -> loosened tolerance.
    assert jnp.allclose(out, ref, atol=5e-2, rtol=5e-2), \
        f"mismatch vs reference (max abs err {max_err:.4f})"

    print("KERNEL_OK")
</pallas_src>

<mosaic_0001>
module attributes {stable_mosaic.version = 11 : i64} {
  func.func @_proj_kernel(%arg0: i32, %arg1: i32, %arg2: i32, %arg3: memref<16x32xf32, #tpu.memory_space<vmem>>, %arg4: memref<32x32xbf16, #tpu.memory_space<vmem>>, %arg5: memref<32x32xbf16, #tpu.memory_space<vmem>>, %arg6: memref<32x32xbf16, #tpu.memory_space<vmem>>, %arg7: memref<16x32xbf16, #tpu.memory_space<vmem>>, %arg8: memref<16x32xbf16, #tpu.memory_space<vmem>>, %arg9: memref<16x32xbf16, #tpu.memory_space<vmem>>, %arg10: memref<16x32xf32, #tpu.memory_space<vmem>>, %arg11: memref<16x32xf32, #tpu.memory_space<vmem>>, %arg12: memref<16x32xf32, #tpu.memory_space<vmem>>) attributes {dimension_semantics = [#tpu.dimension_semantics<parallel>, #tpu.dimension_semantics<parallel>, #tpu.dimension_semantics<arbitrary>], iteration_bounds = array<i64: 1, 1, 1>, scalar_prefetch = 0 : i64, scratch_operands = 3 : i64, tpu.core_type = #tpu.core_type<tc>, window_params = [{transform_indices = @transform_0, window_bounds = array<i64: 16, 32>}, {transform_indices = @transform_1, window_bounds = array<i64: 32, 32>}, {transform_indices = @transform_2, window_bounds = array<i64: 32, 32>}, {transform_indices = @transform_3, window_bounds = array<i64: 32, 32>}, {transform_indices = @transform_4, window_bounds = array<i64: 16, 32>}, {transform_indices = @transform_5, window_bounds = array<i64: 16, 32>}, {transform_indices = @transform_6, window_bounds = array<i64: 16, 32>}]} {
    %c0_i32 = arith.constant 0 : i32
    %0 = arith.cmpi eq, %arg2, %c0_i32 : i32
    %1 = arith.extui %0 : i1 to i32
    %c0_i32_0 = arith.constant 0 : i32
    %2 = arith.cmpi ne, %1, %c0_i32_0 : i32
    scf.if %2 {
      %cst_24 = arith.constant 0.000000e+00 : f32
      %23 = vector.broadcast %cst_24 : f32 to vector<16x32xf32>
      %c0_25 = arith.constant 0 : index
      %c0_26 = arith.constant 0 : index
      %24 = vector.load %arg10[%c0_25, %c0_26] : memref<16x32xf32, #tpu.memory_space<vmem>>, vector<16x32xf32>
      tpu.vector_store %arg10[%c0_25, %c0_26], %23 {strides = array<i32>} : memref<16x32xf32, #tpu.memory_space<vmem>>, vector<16x32xf32>,
      %cst_27 = arith.constant 0.000000e+00 : f32
      %25 = vector.broadcast %cst_27 : f32 to vector<16x32xf32>
      %c0_28 = arith.constant 0 : index
      %c0_29 = arith.constant 0 : index
      %26 = vector.load %arg11[%c0_28, %c0_29] : memref<16x32xf32, #tpu.memory_space<vmem>>, vector<16x32xf32>
      tpu.vector_store %arg11[%c0_28, %c0_29], %25 {strides = array<i32>} : memref<16x32xf32, #tpu.memory_space<vmem>>, vector<16x32xf32>,
      %cst_30 = arith.constant 0.000000e+00 : f32
      %27 = vector.broadcast %cst_30 : f32 to vector<16x32xf32>
      %c0_31 = arith.constant 0 : index
      %c0_32 = arith.constant 0 : index
      %28 = vector.load %arg12[%c0_31, %c0_32] : memref<16x32xf32, #tpu.memory_space<vmem>>, vector<16x32xf32>
      tpu.vector_store %arg12[%c0_31, %c0_32], %27 {strides = array<i32>} : memref<16x32xf32, #tpu.memory_space<vmem>>, vector<16x32xf32>,
    } else {
    }
    %c0 = arith.constant 0 : index
    %c0_1 = arith.constant 0 : index
    %3 = vector.load %arg3[%c0, %c0_1] : memref<16x32xf32, #tpu.memory_space<vmem>>, vector<16x32xf32>
    %4 = arith.truncf %3 : vector<16x32xf32> to vector<16x32xbf16>
    %c0_2 = arith.constant 0 : index
    %c0_3 = arith.constant 0 : index
    %5 = vector.load %arg10[%c0_2, %c0_3] : memref<16x32xf32, #tpu.memory_space<vmem>>, vector<16x32xf32>
    %c0_4 = arith.constant 0 : index
    %c0_5 = arith.constant 0 : index
    %6 = vector.load %arg4[%c0_4, %c0_5] : memref<32x32xbf16, #tpu.memory_space<vmem>>, vector<32x32xbf16>
    %cst = arith.constant dense<0.000000e+00> : vector<16x32xf32>
    %7 = tpu.matmul %4, %6, %cst {dimension_numbers = #tpu.dot_dimension_numbers<[1], [0], [0], [1], [0, 0, 1, 1], [], []>} : vector<16x32xbf16>, vector<32x32xbf16>, vector<16x32xf32> -> vector<16x32xf32>
    %8 = arith.addf %5, %7 : vector<16x32xf32>
    %c0_6 = arith.constant 0 : index
    %c0_7 = arith.constant 0 : index
    %9 = vector.load %arg10[%c0_6, %c0_7] : memref<16x32xf32, #tpu.memory_space<vmem>>, vector<16x32xf32>
    tpu.vector_store %arg10[%c0_6, %c0_7], %8 {strides = array<i32>} : memref<16x32xf32, #tpu.memory_space<vmem>>, vector<16x32xf32>,
    %c0_8 = arith.constant 0 : index
    %c0_9 = arith.constant 0 : index
    %10 = vector.load %arg11[%c0_8, %c0_9] : memref<16x32xf32, #tpu.memory_space<vmem>>, vector<16x32xf32>
    %c0_10 = arith.constant 0 : index
    %c0_11 = arith.constant 0 : index
    %11 = vector.load %arg5[%c0_10, %c0_11] : memref<32x32xbf16, #tpu.memory_space<vmem>>, vector<32x32xbf16>
    %cst_12 = arith.constant dense<0.000000e+00> : vector<16x32xf32>
    %12 = tpu.matmul %4, %11, %cst_12 {dimension_numbers = #tpu.dot_dimension_numbers<[1], [0], [0], [1], [0, 0, 1, 1], [], []>} : vector<16x32xbf16>, vector<32x32xbf16>, vector<16x32xf32> -> vector<16x32xf32>
    %13 = arith.addf %10, %12 : vector<16x32xf32>
    %c0_13 = arith.constant 0 : index
    %c0_14 = arith.constant 0 : index
    %14 = vector.load %arg11[%c0_13, %c0_14] : memref<16x32xf32, #tpu.memory_space<vmem>>, vector<16x32xf32>
    tpu.vector_store %arg11[%c0_13, %c0_14], %13 {strides = array<i32>} : memref<16x32xf32, #tpu.memory_space<vmem>>, vector<16x32xf32>,
    %c0_15 = arith.constant 0 : index
    %c0_16 = arith.constant 0 : index
    %15 = vector.load %arg12[%c0_15, %c0_16] : memref<16x32xf32, #tpu.memory_space<vmem>>, vector<16x32xf32>
    %c0_17 = arith.constant 0 : index
    %c0_18 = arith.constant 0 : index
    %16 = vector.load %arg6[%c0_17, %c0_18] : memref<32x32xbf16, #tpu.memory_space<vmem>>, vector<32x32xbf16>
    %cst_19 = arith.constant dense<0.000000e+00> : vector<16x32xf32>
    %17 = tpu.matmul %4, %16, %cst_19 {dimension_numbers = #tpu.dot_dimension_numbers<[1], [0], [0], [1], [0, 0, 1, 1], [], []>} : vector<16x32xbf16>, vector<32x32xbf16>, vector<16x32xf32> -> vector<16x32xf32>
    %18 = arith.addf %15, %17 : vector<16x32xf32>
    %c0_20 = arith.constant 0 : index
    %c0_21 = arith.constant 0 : index
    %19 = vector.load %arg12[%c0_20, %c0_21] : memref<16x32xf32, #tpu.memory_space<vmem>>, vector<16x32xf32>
    tpu.vector_store %arg12[%c0_20, %c0_21], %18 {strides = array<i32>} : memref<16x32xf32, #tpu.memory_space<vmem>>, vector<16x32xf32>,
    %c0_i32_22 = arith.constant 0 : i32
    %20 = arith.cmpi eq, %arg2, %c0_i32_22 : i32
    %21 = arith.extui %20 : i1 to i32
    %c0_i32_23 = arith.constant 0 : i32
    %22 = arith.cmpi ne, %21, %c0_i32_23 : i32
    scf.if %22 {
      %c0_24 = arith.constant 0 : index
      %c0_25 = arith.constant 0 : index
      %23 = vector.load %arg10[%c0_24, %c0_25] : memref<16x32xf32, #tpu.memory_space<vmem>>, vector<16x32xf32>
      %24 = arith.truncf %23 : vector<16x32xf32> to vector<16x32xbf16>
      %c0_26 = arith.constant 0 : index
      %c0_27 = arith.constant 0 : index
      %25 = vector.load %arg7[%c0_26, %c0_27] : memref<16x32xbf16, #tpu.memory_space<vmem>>, vector<16x32xbf16>
      tpu.vector_store %arg7[%c0_26, %c0_27], %24 {strides = array<i32>} : memref<16x32xbf16, #tpu.memory_space<vmem>>, vector<16x32xbf16>,
      %c0_28 = arith.constant 0 : index
      %c0_29 = arith.constant 0 : index
      %26 = vector.load %arg11[%c0_28, %c0_29] : memref<16x32xf32, #tpu.memory_space<vmem>>, vector<16x32xf32>
      %27 = arith.truncf %26 : vector<16x32xf32> to vector<16x32xbf16>
      %c0_30 = arith.constant 0 : index
      %c0_31 = arith.constant 0 : index
      %28 = vector.load %arg8[%c0_30, %c0_31] : memref<16x32xbf16, #tpu.memory_space<vmem>>, vector<16x32xbf16>
      tpu.vector_store %arg8[%c0_30, %c0_31], %27 {strides = array<i32>} : memref<16x32xbf16, #tpu.memory_space<vmem>>, vector<16x32xbf16>,
      %c0_32 = arith.constant 0 : index
      %c0_33 = arith.constant 0 : index
      %29 = vector.load %arg12[%c0_32, %c0_33] : memref<16x32xf32, #tpu.memory_space<vmem>>, vector<16x32xf32>
      %30 = arith.truncf %29 : vector<16x32xf32> to vector<16x32xbf16>
      %c0_34 = arith.constant 0 : index
      %c0_35 = arith.constant 0 : index
      %31 = vector.load %arg9[%c0_34, %c0_35] : memref<16x32xbf16, #tpu.memory_space<vmem>>, vector<16x32xbf16>
      tpu.vector_store %arg9[%c0_34, %c0_35], %30 {strides = array<i32>} : memref<16x32xbf16, #tpu.memory_space<vmem>>, vector<16x32xbf16>,
    } else {
    }
    return
  }
  func.func @transform_0(%arg0: i32, %arg1: i32, %arg2: i32) -> (i32, i32) {
    %c0_i32 = arith.constant 0 : i32
    return %arg0, %arg2 : i32, i32
  }
  func.func @transform_1(%arg0: i32, %arg1: i32, %arg2: i32) -> (i32, i32) {
    %c0_i32 = arith.constant 0 : i32
    return %arg2, %arg1 : i32, i32
  }
  func.func @transform_2(%arg0: i32, %arg1: i32, %arg2: i32) -> (i32, i32) {
    %c0_i32 = arith.constant 0 : i32
    return %arg2, %arg1 : i32, i32
  }
  func.func @transform_3(%arg0: i32, %arg1: i32, %arg2: i32) -> (i32, i32) {
    %c0_i32 = arith.constant 0 : i32
    return %arg2, %arg1 : i32, i32
  }
  func.func @transform_4(%arg0: i32, %arg1: i32, %arg2: i32) -> (i32, i32) {
    %c0_i32 = arith.constant 0 : i32
    return %arg0, %arg1 : i32, i32
  }
  func.func @transform_5(%arg0: i32, %arg1: i32, %arg2: i32) -> (i32, i32) {
    %c0_i32 = arith.constant 0 : i32
    return %arg0, %arg1 : i32, i32
  }
  func.func @transform_6(%arg0: i32, %arg1: i32, %arg2: i32) -> (i32, i32) {
    %c0_i32 = arith.constant 0 : i32
    return %arg0, %arg1 : i32, i32
  }
}

</mosaic_0001>

<llo_original>
// kernel: tpu_custom_call.1
$region0: #{tpu_custom_call.1}
  #allocation0 [shape = 'u32[]', space=smem, size = 0x4, offset = 0x4, fixed_abs, tag = 'smem constant byte address 0x4 - core index']
  #allocation1 [shape = 'u32[72,128]{1,0:T(1,128)}', space=vmem, size = 0x9000, scoped, tag = 'internal scratch']
  #allocation2 [shape = 'f32[16,32]{1,0:T(8,128)}', space=vmem, size = 0x2000, scoped, tag = 'scratch operand']
  #allocation3 [shape = 'f32[16,32]{1,0:T(8,128)}', space=vmem, size = 0x2000, scoped, tag = 'scratch operand']
  #allocation4 [shape = 'f32[16,32]{1,0:T(8,128)}', space=vmem, size = 0x2000, scoped, tag = 'scratch operand']
  %s0 = inlined_call_operand.hbm [shape: f32[16,32], index: 0, kind: input, shape index: {}]
  %s1 = inlined_call_operand.hbm [shape: bf16[32,32], index: 1, kind: input, shape index: {}]
  %s2 = inlined_call_operand.hbm [shape: bf16[32,32], index: 2, kind: input, shape index: {}]
  %s3 = inlined_call_operand.hbm [shape: bf16[32,32], index: 3, kind: input, shape index: {}]
  %s4 = inlined_call_operand.hbm [shape: bf16[16,32], index: 4, kind: output, shape index: {0}]
  %s5 = inlined_call_operand.hbm [shape: bf16[16,32], index: 5, kind: output, shape index: {1}]
  %s6 = inlined_call_operand.hbm [shape: bf16[16,32], index: 6, kind: output, shape index: {2}]
  %7 = xla_tuple %s4, %s5, %s6
  %s8 = sld [smem:[#allocation0]]
  $region66: #{tpu_custom_call.1} parent=0
    _
  %s10 = ssub.s32 1, %s8
  %s11 = scalar_select 0, %s10, %s8
  $region1: #{tpu_custom_call.1} parent=0
    #allocation5 [shape = 'u8[8192]{0}', space=vmem, size = 0x2000, scoped, tag = 'input window, operand 0, single buffered']
    #allocation6 [shape = 's32[1]{0}', space=sflag, size = 0x4, scoped, tag = 'scoped memory for tpu_custom_call.1']
    #allocation7 [shape = 's32[1]{0}', space=sflag, size = 0x4, scoped, tag = 'scoped memory for tpu_custom_call.1']
    #allocation8 [shape = 'u8[8192]{0}', space=vmem, size = 0x2000, scoped, tag = 'input window, operand 1, single buffered']
    #allocation9 [shape = 's32[1]{0}', space=sflag, size = 0x4, scoped, tag = 'scoped memory for tpu_custom_call.1']
    #allocation10 [shape = 'u8[8192]{0}', space=vmem, size = 0x2000, scoped, tag = 'input window, operand 2, single buffered']
    #allocation11 [shape = 'u8[8192]{0}', space=vmem, size = 0x2000, scoped, tag = 'input window, operand 3, single buffered']
    #allocation12 [shape = 's32[1]{0}', space=sflag, size = 0x4, scoped, tag = 'scoped memory for tpu_custom_call.1']
    #allocation13 [shape = 'u8[4096]{0}', space=vmem, size = 0x1000, scoped, tag = 'output window, operand 0, single buffered']
    #allocation14 [shape = 'u8[4096]{0}', space=vmem, size = 0x1000, scoped, tag = 'output window, operand 1, single buffered']
    #allocation15 [shape = 's32[1]{0}', space=sflag, size = 0x4, scoped, tag = 'scoped memory for tpu_custom_call.1']
    #allocation16 [shape = 'u8[4096]{0}', space=vmem, size = 0x1000, scoped, tag = 'output window, operand 2, single buffered']
    %12 = vsyncpa [#allocation6], 0
    %13 = vsyncpa [#allocation9], 0
    %14 = vsyncpa [#allocation12], 0
    %15 = vsyncpa [#allocation7], 0
    %16 = vsyncpa [#allocation15], 0
    // Predicated region
    $region2: #{tpu_custom_call.1} parent=1 // pred_check
      _
    $region3: #{tpu_custom_call.1} parent=1 // pred_check_branch
      %18 = sbr.rel (0) target = $region5
    $region4: #{tpu_custom_call.1} parent=1 // pred_region
      %20 = vsyncadd [#allocation6], 0
      %s21 = sshll.u32 %s0, 4
      %s22 = int_to_ptr.hbm [resolvable:$true] %s21
      %s23 = sshll.u32 [#allocation5], 4
      %s24 = int_to_ptr.vmem [resolvable:$true] %s23
      %29 = dma.hbm_to_vmem [thread:$0]  %s22, 256, %s24, [#allocation6], 128, 128, 8
    $region5: #{tpu_custom_call.1} parent=1 // pred_fallthru
      _
    // Predicated region
    $region6: #{tpu_custom_call.1} parent=1 // pred_check
      _
    $region7: #{tpu_custom_call.1} parent=1 // pred_check_branch
      %31 = sbr.rel (0) target = $region9
    $region8: #{tpu_custom_call.1} parent=1 // pred_region
      %33 = vsyncadd [#allocation9], 0
      %s34 = sshll.u32 %s1, 4
      %s35 = int_to_ptr.hbm [resolvable:$true] %s34
      %s36 = sshll.u32 [#allocation8], 4
      %s37 = int_to_ptr.vmem [resolvable:$true] %s36
      %42 = dma.hbm_to_vmem [thread:$0]  %s35, 256, %s37, [#allocation9], 64, 64, 4
    $region9: #{tpu_custom_call.1} parent=1 // pred_fallthru
      _
    // Predicated region
    $region10: #{tpu_custom_call.1} parent=1 // pred_check
      _
    $region11: #{tpu_custom_call.1} parent=1 // pred_check_branch
      %44 = sbr.rel (0) target = $region13
    $region12: #{tpu_custom_call.1} parent=1 // pred_region
      %46 = vsyncadd [#allocation9], 0
      %s47 = sshll.u32 %s2, 4
      %s48 = int_to_ptr.hbm [resolvable:$true] %s47
      %s49 = sshll.u32 [#allocation10], 4
      %s50 = int_to_ptr.vmem [resolvable:$true] %s49
      %55 = dma.hbm_to_vmem [thread:$0]  %s48, 256, %s50, [#allocation9], 64, 64, 4
    $region13: #{tpu_custom_call.1} parent=1 // pred_fallthru
      _
    // Predicated region
    $region14: #{tpu_custom_call.1} parent=1 // pred_check
      _
    $region15: #{tpu_custom_call.1} parent=1 // pred_check_branch
      %57 = sbr.rel (0) target = $region17
    $region16: #{tpu_custom_call.1} parent=1 // pred_region
      %59 = vsyncadd [#allocation12], 0
      %s60 = sshll.u32 %s3, 4
      %s61 = int_to_ptr.hbm [resolvable:$true] %s60
      %s62 = sshll.u32 [#allocation11], 4
      %s63 = int_to_ptr.vmem [resolvable:$true] %s62
      %68 = dma.hbm_to_vmem [thread:$0]  %s61, 256, %s63, [#allocation12], 64, 64, 4
    $region17: #{tpu_custom_call.1} parent=1 // pred_fallthru
      _
    // Predicated region
    $region18: #{tpu_custom_call.1} parent=1 // pred_check
      _
    $region19: #{tpu_custom_call.1} parent=1 // pred_check_branch
      %70 = sbr.rel (0) target = $region21
    $region20: #{tpu_custom_call.1} parent=1 // pred_region
      %72 = dma.done [#allocation6], 256
    $region21: #{tpu_custom_call.1} parent=1 // pred_fallthru
      _
    // Predicated region
    $region22: #{tpu_custom_call.1} parent=1 // pred_check
      _
    $region23: #{tpu_custom_call.1} parent=1 // pred_check_branch
      %74 = sbr.rel (0) target = $region25
    $region24: #{tpu_custom_call.1} parent=1 // pred_region
      %76 = dma.done [#allocation9], 256
    $region25: #{tpu_custom_call.1} parent=1 // pred_fallthru
      _
    // Predicated region
    $region26: #{tpu_custom_call.1} parent=1 // pred_check
      _
    $region27: #{tpu_custom_call.1} parent=1 // pred_check_branch
      %78 = sbr.rel (0) target = $region29
    $region28: #{tpu_custom_call.1} parent=1 // pred_region
      %80 = dma.done [#allocation9], 256
    $region29: #{tpu_custom_call.1} parent=1 // pred_fallthru
      _
    // Predicated region
    $region30: #{tpu_custom_call.1} parent=1 // pred_check
      _
    $region31: #{tpu_custom_call.1} parent=1 // pred_check_branch
      %82 = sbr.rel (0) target = $region33
    $region32: #{tpu_custom_call.1} parent=1 // pred_region
      %84 = dma.done [#allocation12], 256
    $region33: #{tpu_custom_call.1} parent=1 // pred_fallthru
      _
    %p86 = scmp.eq.s32.totalorder 0, 0
    // Predicated region
    $region34: #{tpu_custom_call.1} parent=1 // pred_check
      %p87 = pneg %p86
    $region35: #{tpu_custom_call.1} parent=1 // pred_check_branch
      %89 = sbr.rel (%p87) target = $region37
    $region36: #{tpu_custom_call.1} parent=1 // pred_region
      %vm90 = vcmask 261120
      %91 = vst.msk [vmem:[#allocation2] sm:$0xff] %vm90, 0.0
      %92 = vst.msk [vmem:[#allocation2 + $0x8] sm:$0xff] %vm90, 0.0
      %93 = vst.msk [vmem:[#allocation3] sm:$0xff] %vm90, 0.0
      %94 = vst.msk [vmem:[#allocation3 + $0x8] sm:$0xff] %vm90, 0.0
      %95 = vst.msk [vmem:[#allocation4] sm:$0xff] %vm90, 0.0
      %96 = vst.msk [vmem:[#allocation4 + $0x8] sm:$0xff] %vm90, 0.0
    $region37: #{tpu_custom_call.1} parent=1 // pred_fallthru
      _
    %v97 = vld [vmem:[#allocation5] sm:$0xff]
    %v98 = vld [vmem:[#allocation5 + $0x8] sm:$0xff]
    %v99 = vpack.c.bf16 %v98, %v97
    %v100 = vld [vmem:[#allocation2] sm:$0xff]
    %v101 = vld [vmem:[#allocation2 + $0x8] sm:$0xff]
    %v102 = vld [vmem:[#allocation8] sm:$0xf]
    %v103 = vld [vmem:[#allocation8 + $0x4] sm:$0xf]
    %v104 = vld [vmem:[#allocation8 + $0x8] sm:$0xf]
    %v105 = vld [vmem:[#allocation8 + $0xc] sm:$0xf]
    %v110 = vunpack.c.l.b16 %v102
    %v111 = vunpack.c.l.b16 %v103
    %v112 = vunpack.c.l.b16 %v104
    %v113 = vunpack.c.l.b16 %v105
    %v114 = vpack.c.b16 %v111, %v110
    %v115 = vpack.c.b16 %v113, %v112
    %vm118 = vcmask 261120
    %v120 = vsel %vm118, %v99, 0
    %122 = vmatpush.bf16.msra.mxu0 0
    %123 = vmatpush.bf16.msra.mxu0 0
    %124 = vmatpush.bf16.msra.mxu0 0
    %125 = vmatpush.bf16.msra.mxu0 0
    %126 = vmatpush.bf16.msra.mxu0 0
    %127 = vmatpush.bf16.msra.mxu0 0
    %128 = vmatpush.bf16.msra.mxu0 %v115
    %129 = vmatpush.bf16.msra.mxu0 %v114
    %130 = vmatmul.bf16.gmra.mxu0 %v120
    %v131 = vpop.f32.mrf.mxu0
    %v132 = vadd.f32 0.0, %v131
    %v133 = vpop.f32.mrf.mxu0
    %v134 = vadd.f32 0.0, %v133
    %135 = vdwg.mxu0
    %v136 = vadd.f32 %v100, %v132
    %v137 = vadd.f32 %v101, %v134
    %138 = vst.msk [vmem:[#allocation2] sm:$0xff] %vm118, %v136
    %139 = vst.msk [vmem:[#allocation2 + $0x8] sm:$0xff] %vm118, %v137
    %v140 = vld [vmem:[#allocation3] sm:$0xff]
    %v141 = vld [vmem:[#allocation3 + $0x8] sm:$0xff]
    %v142 = vld [vmem:[#allocation10] sm:$0xf]
    %v143 = vld [vmem:[#allocation10 + $0x4] sm:$0xf]
    %v144 = vld [vmem:[#allocation10 + $0x8] sm:$0xf]
    %v145 = vld [vmem:[#allocation10 + $0xc] sm:$0xf]
    %v150 = vunpack.c.l.b16 %v142
    %v151 = vunpack.c.l.b16 %v143
    %v152 = vunpack.c.l.b16 %v144
    %v153 = vunpack.c.l.b16 %v145
    %v154 = vpack.c.b16 %v151, %v150
    %v155 = vpack.c.b16 %v153, %v152
    %158 = vmatpush.bf16.msra.mxu0 0
    %159 = vmatpush.bf16.msra.mxu0 0
    %160 = vmatpush.bf16.msra.mxu0 0
    %161 = vmatpush.bf16.msra.mxu0 0
    %162 = vmatpush.bf16.msra.mxu0 0
    %163 = vmatpush.bf16.msra.mxu0 0
    %164 = vmatpush.bf16.msra.mxu0 %v155
    %165 = vmatpush.bf16.msra.mxu0 %v154
    %166 = vmatmul.bf16.gmra.mxu0 %v120
    %v167 = vpop.f32.mrf.mxu0
    %v168 = vadd.f32 0.0, %v167
    %v169 = vpop.f32.mrf.mxu0
    %v170 = vadd.f32 0.0, %v169
    %171 = vdwg.mxu0
    %v172 = vadd.f32 %v140, %v168
    %v173 = vadd.f32 %v141, %v170
    %174 = vst.msk [vmem:[#allocation3] sm:$0xff] %vm118, %v172
    %175 = vst.msk [vmem:[#allocation3 + $0x8] sm:$0xff] %vm118, %v173
    %v176 = vld [vmem:[#allocation4] sm:$0xff]
    %v177 = vld [vmem:[#allocation4 + $0x8] sm:$0xff]
    %v178 = vld [vmem:[#allocation11] sm:$0xf]
    %v179 = vld [vmem:[#allocation11 + $0x4] sm:$0xf]
    %v180 = vld [vmem:[#allocation11 + $0x8] sm:$0xf]
    %v181 = vld [vmem:[#allocation11 + $0xc] sm:$0xf]
    %v186 = vunpack.c.l.b16 %v178
    %v187 = vunpack.c.l.b16 %v179
    %v188 = vunpack.c.l.b16 %v180
    %v189 = vunpack.c.l.b16 %v181
    %v190 = vpack.c.b16 %v187, %v186
    %v191 = vpack.c.b16 %v189, %v188
    %194 = vmatpush.bf16.msra.mxu0 0
    %195 = vmatpush.bf16.msra.mxu0 0
    %196 = vmatpush.bf16.msra.mxu0 0
    %197 = vmatpush.bf16.msra.mxu0 0
    %198 = vmatpush.bf16.msra.mxu0 0
    %199 = vmatpush.bf16.msra.mxu0 0
    %200 = vmatpush.bf16.msra.mxu0 %v191
    %201 = vmatpush.bf16.msra.mxu0 %v190
    %202 = vmatmul.bf16.gmra.mxu0 %v120
    %v203 = vpop.f32.mrf.mxu0
    %v204 = vadd.f32 0.0, %v203
    %v205 = vpop.f32.mrf.mxu0
    %v206 = vadd.f32 0.0, %v205
    %207 = vdwg.mxu0
    %v208 = vadd.f32 %v176, %v204
    %v209 = vadd.f32 %v177, %v206
    %210 = vst.msk [vmem:[#allocation4] sm:$0xff] %vm118, %v208
    %211 = vst.msk [vmem:[#allocation4 + $0x8] sm:$0xff] %vm118, %v209
    // Predicated region
    $region38: #{tpu_custom_call.1} parent=1 // pred_check
      %p212 = pneg %p86
    $region39: #{tpu_custom_call.1} parent=1 // pred_check_branch
      %214 = sbr.rel (%p212) target = $region41
    $region40: #{tpu_custom_call.1} parent=1 // pred_region
      %v215 = vld [vmem:[#allocation2] sm:$0xff]
      %v216 = vld [vmem:[#allocation2 + $0x8] sm:$0xff]
      %v217 = vpack.c.bf16 %v215, %v215
      %v218 = vpack.c.bf16 %v216, %v216
      %vm219 = vcmask 257024
      %220 = vst.msk [vmem:[#allocation13] sm:$0xf] %vm219, %v217
      %221 = vst.msk [vmem:[#allocation13 + $0x4] sm:$0xf] %vm219, %v218
      %v222 = vld [vmem:[#allocation3] sm:$0xff]
      %v223 = vld [vmem:[#allocation3 + $0x8] sm:$0xff]
      %v224 = vpack.c.bf16 %v222, %v222
      %v225 = vpack.c.bf16 %v223, %v223
      %226 = vst.msk [vmem:[#allocation14] sm:$0xf] %vm219, %v224
      %227 = vst.msk [vmem:[#allocation14 + $0x4] sm:$0xf] %vm219, %v225
      %v228 = vld [vmem:[#allocation4] sm:$0xff]
      %v229 = vld [vmem:[#allocation4 + $0x8] sm:$0xff]
      %v230 = vpack.c.bf16 %v228, %v228
      %v231 = vpack.c.bf16 %v229, %v229
      %232 = vst.msk [vmem:[#allocation16] sm:$0xf] %vm219, %v230
      %233 = vst.msk [vmem:[#allocation16 + $0x4] sm:$0xf] %vm219, %v231
    $region41: #{tpu_custom_call.1} parent=1 // pred_fallthru
      _
    // Predicated region
    $region42: #{tpu_custom_call.1} parent=1 // pred_check
      _
    $region43: #{tpu_custom_call.1} parent=1 // pred_check_branch
      %235 = sbr.rel (0) target = $region45
    $region44: #{tpu_custom_call.1} parent=1 // pred_region
      %237 = vsyncadd [#allocation7], 0
      %s238 = sshll.u32 [#allocation13], 4
      %s239 = int_to_ptr.vmem [resolvable:$true] %s238
      %s240 = sshll.u32 %s4, 4
      %s241 = int_to_ptr.hbm [resolvable:$true] %s240
      %246 = dma.vmem_to_hbm [thread:$0]  %s239, 128, %s241, [#allocation7], 64, 64, 4
    $region45: #{tpu_custom_call.1} parent=1 // pred_fallthru
      _
    // Predicated region
    $region46: #{tpu_custom_call.1} parent=1 // pred_check
      _
    $region47: #{tpu_custom_call.1} parent=1 // pred_check_branch
      %248 = sbr.rel (0) target = $region49
    $region48: #{tpu_custom_call.1} parent=1 // pred_region
      %250 = vsyncadd [#allocation15], 0
      %s251 = sshll.u32 [#allocation14], 4
      %s252 = int_to_ptr.vmem [resolvable:$true] %s251
      %s253 = sshll.u32 %s5, 4
      %s254 = int_to_ptr.hbm [resolvable:$true] %s253
      %259 = dma.vmem_to_hbm [thread:$0]  %s252, 128, %s254, [#allocation15], 64, 64, 4
    $region49: #{tpu_custom_call.1} parent=1 // pred_fallthru
      _
    // Predicated region
    $region50: #{tpu_custom_call.1} parent=1 // pred_check
      _
    $region51: #{tpu_custom_call.1} parent=1 // pred_check_branch
      %261 = sbr.rel (0) target = $region53
    $region52: #{tpu_custom_call.1} parent=1 // pred_region
      %263 = vsyncadd [#allocation15], 0
      %s264 = sshll.u32 [#allocation16], 4
      %s265 = int_to_ptr.vmem [resolvable:$true] %s264
      %s266 = sshll.u32 %s6, 4
      %s267 = int_to_ptr.hbm [resolvable:$true] %s266
      %272 = dma.vmem_to_hbm [thread:$0]  %s265, 128, %s267, [#allocation15], 64, 64, 4
    $region53: #{tpu_custom_call.1} parent=1 // pred_fallthru
      _
    // Predicated region
    $region54: #{tpu_custom_call.1} parent=1 // pred_check
      _
    $region55: #{tpu_custom_call.1} parent=1 // pred_check_branch
      %274 = sbr.rel (0) target = $region57
    $region56: #{tpu_custom_call.1} parent=1 // pred_region
      %276 = dma.done [#allocation7], 128
    $region57: #{tpu_custom_call.1} parent=1 // pred_fallthru
      _
    // Predicated region
    $region58: #{tpu_custom_call.1} parent=1 // pred_check
      _
    $region59: #{tpu_custom_call.1} parent=1 // pred_check_branch
      %278 = sbr.rel (0) target = $region61
    $region60: #{tpu_custom_call.1} parent=1 // pred_region
      %280 = dma.done [#allocation15], 128
    $region61: #{tpu_custom_call.1} parent=1 // pred_fallthru
      _
    // Predicated region
    $region62: #{tpu_custom_call.1} parent=1 // pred_check
      _
    $region63: #{tpu_custom_call.1} parent=1 // pred_check_branch
      %282 = sbr.rel (0) target = $region65
    $region64: #{tpu_custom_call.1} parent=1 // pred_region
      %284 = dma.done [#allocation15], 128
    $region65: #{tpu_custom_call.1} parent=1 // pred_fallthru
      _
    %285 = vsyncpa [#allocation6], 1
    %286 = vsyncpa [#allocation9], 1
    %287 = vsyncpa [#allocation12], 1
    %288 = vsyncpa [#allocation7], 1
    %289 = vsyncpa [#allocation15], 1

</llo_original>
